<compile_context>
chip_gen: v7x
topology: tpu7x:2x2x1
jax: 0.10.0
libtpu: 0.0.40
codegen_flags: <defaults>
</compile_context>

<pallas_src>
import jax
import jax.numpy as jnp
from jax import lax
from jax.experimental import pallas as pl
from jax.experimental.pallas import tpu as pltpu
import numpy as np

H_DIM = 3           # h_dim in the PyTorch module
# TODO(synk): BytePairTokenizer vocab file is not available in-script; vocab
# size is synthesized (stand-in for max(t.vocab.values()) + 2).
VOCAB_SIZE = 32
POS_SIZE = 16       # rows of the positional-encoding embedding (indices < H_DIM)


def encoding_kernel(ids_ref, embT_ref, posT_ref, out_ref):
    """One grid step processes a lane-dense tile of TN tokens.

    ids_ref : [1, TN] int32  token ids (tokens on the lane axis)
    embT_ref: [D, V]  f32    embedding table, transposed (D on sublanes)
    posT_ref: [D, P]  f32    positional table, transposed
    out_ref : [D, TN] f32    output tile, tokens lane-dense
    """
    embT = embT_ref[...]                     # [D, V]
    posT = posT_ref[...]                     # [D, P]
    ids = ids_ref[...]                       # [1, TN]

    D, V = embT.shape
    TN = ids.shape[1]

    # --- prologue: fold positional encoding into the (tiny) table -----------
    # argmax over the embedding dim per vocab row, first-occurrence tie-break
    # (matches torch.argmax / jnp.argmax).
    maxv = jnp.max(embT, axis=0, keepdims=True)                          # [1, V]
    d_iota = lax.broadcasted_iota(jnp.int32, (D, V), 0)
    idx = jnp.min(jnp.where(embT == maxv, d_iota, D), axis=0,
                  keepdims=True)                                         # [1, V]

    comb = embT                                                          # [D, V]
    for d in range(D):  # D == 3 is static: three VPU selects, no 2nd matmul
        comb = comb + jnp.where(idx == d, posT[:, d:d + 1], 0.0)
    # comb[d, v] = emb[v, d] + pos[argmax_d emb[v, :], d]

    # --- token gather: one-hot(ids) over V, single MXU contraction ----------
    v_iota = lax.broadcasted_iota(jnp.int32, (V, TN), 0)
    onehot = (v_iota == ids).astype(jnp.float32)                         # [V, TN]
    out_ref[...] = jnp.dot(comb, onehot,
                           preferred_element_type=jnp.float32)           # [D, TN]


def encoding_forward(ids, emb_table, pos_table, *, tile_n=128):
    B, S = ids.shape
    V, D = emb_table.shape
    P = pos_table.shape[0]
    N = B * S
    n_pad = pl.cdiv(N, tile_n) * tile_n

    # Flatten tokens onto the lane axis; pad with padding_idx=0 (harmless,
    # sliced off below).
    ids_flat = ids.reshape(1, N).astype(jnp.int32)
    ids_flat = jnp.pad(ids_flat, ((0, 0), (0, n_pad - N)))
    embT = emb_table.T                       # [D, V]
    posT = pos_table.T                       # [D, P]

    out_T = pl.pallas_call(
        encoding_kernel,
        out_shape=jax.ShapeDtypeStruct((D, n_pad), jnp.float32),
        grid_spec=pltpu.PrefetchScalarGridSpec(
            num_scalar_prefetch=0,
            grid=(n_pad // tile_n,),
            in_specs=[
                pl.BlockSpec((1, tile_n), lambda i: (0, i)),   # ids tile
                pl.BlockSpec((D, V), lambda i: (0, 0)),        # emb^T (resident)
                pl.BlockSpec((D, P), lambda i: (0, 0)),        # pos^T (resident)
            ],
            out_specs=pl.BlockSpec((D, tile_n), lambda i: (0, i)),
        ),
        compiler_params=pltpu.CompilerParams(
            dimension_semantics=("parallel",)),
    )(ids_flat, embT, posT)

    # Layout plumbing back to the PyTorch-equivalent [B, S, D].
    return out_T[:, :N].T.reshape(B, S, D)


def reference_forward(ids, emb_table, pos_table):
    emb = emb_table[ids]                     # [B, S, D]
    idx = jnp.argmax(emb, axis=-1)           # [B, S]
    return emb + pos_table[idx]


if __name__ == "__main__":
    key = jax.random.PRNGKey(0)
    k_ids, k_emb, k_pos = jax.random.split(key, 3)

    B, S = 2, 8
    ids = jax.random.randint(k_ids, (B, S), minval=0, maxval=VOCAB_SIZE,
                             dtype=jnp.int32)

    # nn.Embedding(vocab_size, h_dim, padding_idx=0): N(0,1) init, row 0 zeroed.
    emb_table = jax.random.normal(k_emb, (VOCAB_SIZE, H_DIM), dtype=jnp.float32)
    emb_table = emb_table.at[0].set(0.0)

    # positional_encoding modeled as an embedding table indexed by argmax values.
    pos_table = jax.random.normal(k_pos, (POS_SIZE, H_DIM), dtype=jnp.float32)

    out = encoding_forward(ids, emb_table, pos_table)
    out = jax.block_until_ready(out)

    ref = reference_forward(ids, emb_table, pos_table)
    np.testing.assert_allclose(np.asarray(out), np.asarray(ref),
                               rtol=1e-5, atol=1e-5)

    print("KERNEL_OK")
</pallas_src>

<mosaic_0001>
module attributes {stable_mosaic.version = 11 : i64} {
  func.func @encoding_kernel(%arg0: i32, %arg1: memref<1x128xi32, #tpu.memory_space<vmem>>, %arg2: memref<3x32xf32, #tpu.memory_space<vmem>>, %arg3: memref<3x16xf32, #tpu.memory_space<vmem>>, %arg4: memref<3x128xf32, #tpu.memory_space<vmem>>) attributes {dimension_semantics = [#tpu.dimension_semantics<parallel>], iteration_bounds = array<i64: 1>, scalar_prefetch = 0 : i64, scratch_operands = 0 : i64, tpu.core_type = #tpu.core_type<tc>, window_params = [{transform_indices = @transform_0, window_bounds = array<i64: 1, 128>}, {pipeline_mode = #tpu.pipeline_mode<synchronous>, transform_indices = @transform_1, window_bounds = array<i64: 3, 32>}, {pipeline_mode = #tpu.pipeline_mode<synchronous>, transform_indices = @transform_2, window_bounds = array<i64: 3, 16>}, {transform_indices = @transform_3, window_bounds = array<i64: 3, 128>}]} {
    %c0 = arith.constant 0 : index
    %c0_0 = arith.constant 0 : index
    %0 = vector.load %arg2[%c0, %c0_0] : memref<3x32xf32, #tpu.memory_space<vmem>>, vector<3x32xf32>
    %c0_1 = arith.constant 0 : index
    %c0_2 = arith.constant 0 : index
    %1 = vector.load %arg3[%c0_1, %c0_2] : memref<3x16xf32, #tpu.memory_space<vmem>>, vector<3x16xf32>
    %c0_3 = arith.constant 0 : index
    %c0_4 = arith.constant 0 : index
    %2 = vector.load %arg1[%c0_3, %c0_4] : memref<1x128xi32, #tpu.memory_space<vmem>>, vector<1x128xi32>
    %cst = arith.constant dense<0xFF800000> : vector<32xf32>
    %3 = vector.multi_reduction <maximumf>, %0, %cst [0] : vector<3x32xf32> to vector<32xf32>
    %4 = vector.shape_cast %3 : vector<32xf32> to vector<1x32xf32>
    %5 = tpu.iota {dimensions = array<i32: 0>} : vector<3x32xi32>
    %6 = vector.broadcast %4 : vector<1x32xf32> to vector<3x32xf32>
    %7 = arith.cmpf oeq, %0, %6 : vector<3x32xf32>
    %c3_i32 = arith.constant 3 : i32
    %8 = vector.broadcast %c3_i32 : i32 to vector<3x32xi32>
    %9 = arith.select %7, %5, %8 : vector<3x32xi1>, vector<3x32xi32>
    %cst_5 = arith.constant dense<2147483647> : vector<32xi32>
    %10 = vector.multi_reduction <minsi>, %9, %cst_5 [0] : vector<3x32xi32> to vector<32xi32>
    %11 = vector.shape_cast %10 : vector<32xi32> to vector<1x32xi32>
    %c0_i32 = arith.constant 0 : i32
    %12 = vector.broadcast %c0_i32 : i32 to vector<1x32xi32>
    %13 = arith.cmpi eq, %11, %12 : vector<1x32xi32>
    %14 = vector.extract_strided_slice %1 {offsets = [0, 0], sizes = [3, 1], strides = [1, 1]} : vector<3x16xf32> to vector<3x1xf32>
    %cst_6 = arith.constant 0.000000e+00 : f32
    %15 = vector.shape_cast %13 : vector<1x32xi1> to vector<1x32xi1>
    %16 = vector.broadcast %15 : vector<1x32xi1> to vector<3x32xi1>
    %17 = vector.shape_cast %14 : vector<3x1xf32> to vector<3x1xf32>
    %18 = vector.broadcast %17 : vector<3x1xf32> to vector<3x32xf32>
    %19 = vector.broadcast %cst_6 : f32 to vector<3x32xf32>
    %20 = arith.select %16, %18, %19 : vector<3x32xi1>, vector<3x32xf32>
    %21 = arith.addf %0, %20 : vector<3x32xf32>
    %c1_i32 = arith.constant 1 : i32
    %22 = vector.broadcast %c1_i32 : i32 to vector<1x32xi32>
    %23 = arith.cmpi eq, %11, %22 : vector<1x32xi32>
    %24 = vector.extract_strided_slice %1 {offsets = [0, 1], sizes = [3, 1], strides = [1, 1]} : vector<3x16xf32> to vector<3x1xf32>
    %cst_7 = arith.constant 0.000000e+00 : f32
    %25 = vector.shape_cast %23 : vector<1x32xi1> to vector<1x32xi1>
    %26 = vector.broadcast %25 : vector<1x32xi1> to vector<3x32xi1>
    %27 = vector.shape_cast %24 : vector<3x1xf32> to vector<3x1xf32>
    %28 = vector.broadcast %27 : vector<3x1xf32> to vector<3x32xf32>
    %29 = vector.broadcast %cst_7 : f32 to vector<3x32xf32>
    %30 = arith.select %26, %28, %29 : vector<3x32xi1>, vector<3x32xf32>
    %31 = arith.addf %21, %30 : vector<3x32xf32>
    %c2_i32 = arith.constant 2 : i32
    %32 = vector.broadcast %c2_i32 : i32 to vector<1x32xi32>
    %33 = arith.cmpi eq, %11, %32 : vector<1x32xi32>
    %34 = vector.extract_strided_slice %1 {offsets = [0, 2], sizes = [3, 1], strides = [1, 1]} : vector<3x16xf32> to vector<3x1xf32>
    %cst_8 = arith.constant 0.000000e+00 : f32
    %35 = vector.shape_cast %33 : vector<1x32xi1> to vector<1x32xi1>
    %36 = vector.broadcast %35 : vector<1x32xi1> to vector<3x32xi1>
    %37 = vector.shape_cast %34 : vector<3x1xf32> to vector<3x1xf32>
    %38 = vector.broadcast %37 : vector<3x1xf32> to vector<3x32xf32>
    %39 = vector.broadcast %cst_8 : f32 to vector<3x32xf32>
    %40 = arith.select %36, %38, %39 : vector<3x32xi1>, vector<3x32xf32>
    %41 = arith.addf %31, %40 : vector<3x32xf32>
    %42 = tpu.iota {dimensions = array<i32: 0>} : vector<32x128xi32>
    %43 = vector.broadcast %2 : vector<1x128xi32> to vector<32x128xi32>
    %44 = arith.cmpi eq, %42, %43 : vector<32x128xi32>
    %45 = arith.extui %44 : vector<32x128xi1> to vector<32x128xi32>
    %46 = arith.sitofp %45 : vector<32x128xi32> to vector<32x128xf32>
    %cst_9 = arith.constant dense<0.000000e+00> : vector<3x128xf32>
    %47 = tpu.matmul %41, %46, %cst_9 {dimension_numbers = #tpu.dot_dimension_numbers<[1], [0], [0], [1], [0, 0, 1, 1], [], []>} : vector<3x32xf32>, vector<32x128xf32>, vector<3x128xf32> -> vector<3x128xf32>
    %c0_10 = arith.constant 0 : index
    %c0_11 = arith.constant 0 : index
    %48 = vector.load %arg4[%c0_10, %c0_11] : memref<3x128xf32, #tpu.memory_space<vmem>>, vector<3x128xf32>
    tpu.vector_store %arg4[%c0_10, %c0_11], %47 {strides = array<i32>} : memref<3x128xf32, #tpu.memory_space<vmem>>, vector<3x128xf32>,
    return
  }
  func.func @transform_0(%arg0: i32) -> (i32, i32) {
    %c0_i32 = arith.constant 0 : i32
    %c0_i32_0 = arith.constant 0 : i32
    return %c0_i32, %arg0 : i32, i32
  }
  func.func @transform_1(%arg0: i32) -> (i32, i32) {
    %c0_i32 = arith.constant 0 : i32
    %c0_i32_0 = arith.constant 0 : i32
    %c0_i32_1 = arith.constant 0 : i32
    return %c0_i32, %c0_i32_0 : i32, i32
  }
  func.func @transform_2(%arg0: i32) -> (i32, i32) {
    %c0_i32 = arith.constant 0 : i32
    %c0_i32_0 = arith.constant 0 : i32
    %c0_i32_1 = arith.constant 0 : i32
    return %c0_i32, %c0_i32_0 : i32, i32
  }
  func.func @transform_3(%arg0: i32) -> (i32, i32) {
    %c0_i32 = arith.constant 0 : i32
    %c0_i32_0 = arith.constant 0 : i32
    return %c0_i32, %arg0 : i32, i32
  }
}

</mosaic_0001>

<llo_original>
// kernel: tpu_custom_call.1
$region0: #{tpu_custom_call.1}
  #allocation0 [shape = 'u32[]', space=smem, size = 0x4, offset = 0x4, fixed_abs, tag = 'smem constant byte address 0x4 - core index']
  #allocation1 [shape = 'u32[144,128]{1,0:T(1,128)}', space=vmem, size = 0x12000, scoped, tag = 'internal scratch']
  %s0 = inlined_call_operand.hbm [shape: s32[1,128], index: 0, kind: input, shape index: {}]
  %s1 = inlined_call_operand.hbm [shape: f32[3,32], index: 1, kind: input, shape index: {}]
  %s2 = inlined_call_operand.vmem [shape: f32[3,16], index: 2, kind: input, shape index: {}]
  %s3 = inlined_call_operand.hbm [shape: f32[3,128], index: 3, kind: output, shape index: {}]
  %s4 = sld [smem:[#allocation0]]
  $region30: #{tpu_custom_call.1} parent=0
    _
  %s6 = ssub.s32 1, %s4
  %s7 = scalar_select 0, %s6, %s4
  $region1: #{tpu_custom_call.1} parent=0
    #allocation2 [shape = 'u8[512]{0}', space=vmem, size = 0x400, scoped, tag = 'input window, operand 0, single buffered']
    #allocation3 [shape = 's32[1]{0}', space=sflag, size = 0x4, scoped, tag = 'scoped memory for tpu_custom_call.1']
    #allocation4 [shape = 's32[1]{0}', space=sflag, size = 0x4, scoped, tag = 'scoped memory for tpu_custom_call.1']
    #allocation5 [shape = 'u8[2048]{0}', space=vmem, size = 0x800, scoped, tag = 'input window, operand 1, single buffered']
    #allocation6 [shape = 's32[1]{0}', space=sflag, size = 0x4, scoped, tag = 'scoped memory for tpu_custom_call.1']
    #allocation7 [shape = 'u8[2048]{0}', space=vmem, size = 0x800, scoped, tag = 'output window, operand 0, single buffered']
    %8 = vsyncpa [#allocation3], 0
    %9 = vsyncpa [#allocation6], 0
    %10 = vsyncpa [#allocation4], 0
    // Predicated region
    $region2: #{tpu_custom_call.1} parent=1 // pred_check
      _
    $region3: #{tpu_custom_call.1} parent=1 // pred_check_branch
      %12 = sbr.rel (0) target = $region5
    $region4: #{tpu_custom_call.1} parent=1 // pred_region
      %s14 = ssub.s32 16, 16
      %15 = vsyncadd [#allocation3], %s14
      %s17 = sshll.u32 [#allocation2], 4
      %s18 = int_to_ptr.vmem [resolvable:$true] %s17
      %20 = dma.hbm_to_vmem [thread:$0]  %s0, 16, %s18, [#allocation3]
    $region5: #{tpu_custom_call.1} parent=1 // pred_fallthru
      _
    // Predicated region
    $region6: #{tpu_custom_call.1} parent=1 // pred_check
      _
    $region7: #{tpu_custom_call.1} parent=1 // pred_check_branch
      %22 = sbr.rel (0) target = $region9
    $region8: #{tpu_custom_call.1} parent=1 // pred_region
      %s24 = ssub.s32 64, 64
      %25 = vsyncadd [#allocation6], %s24
      %s27 = sshll.u32 [#allocation5], 4
      %s28 = int_to_ptr.vmem [resolvable:$true] %s27
      %30 = dma.hbm_to_vmem [thread:$0]  %s1, 64, %s28, [#allocation6]
    $region9: #{tpu_custom_call.1} parent=1 // pred_fallthru
      _
    // Predicated region
    $region10: #{tpu_custom_call.1} parent=1 // pred_check
      _
    $region11: #{tpu_custom_call.1} parent=1 // pred_check_branch
      %32 = sbr.rel (0) target = $region13
    $region12: #{tpu_custom_call.1} parent=1 // pred_region
      _
    $region13: #{tpu_custom_call.1} parent=1 // pred_fallthru
      _
    // Predicated region
    $region14: #{tpu_custom_call.1} parent=1 // pred_check
      _
    $region15: #{tpu_custom_call.1} parent=1 // pred_check_branch
      %34 = sbr.rel (0) target = $region17
    $region16: #{tpu_custom_call.1} parent=1 // pred_region
      %35 = dma.done [#allocation3], 16
    $region17: #{tpu_custom_call.1} parent=1 // pred_fallthru
      _
    // Predicated region
    $region18: #{tpu_custom_call.1} parent=1 // pred_check
      _
    $region19: #{tpu_custom_call.1} parent=1 // pred_check_branch
      %37 = sbr.rel (0) target = $region21
    $region20: #{tpu_custom_call.1} parent=1 // pred_region
      %38 = dma.done [#allocation6], 64
    $region21: #{tpu_custom_call.1} parent=1 // pred_fallthru
      _
    %v39 = vld [vmem:[#allocation5] sm:$0x7]
    %v40 = vld [vmem:[%s2] sm:$0x7]
    %v41 = vld [vmem:[#allocation2] sm:$0x1]
    %vm42 = vcmask 256000
    %v43 = vsel %vm42, %v39, -inf
    %v44 = vrot.slane %v43, 4
    %v45 = vmax.f32 %v43, %v44
    %v46 = vrot.slane %v45, 2
    %v47 = vmax.f32 %v45, %v46
    %v48 = vrot.slane %v47, 1
    %v49 = vmax.f32 %v47, %v48
    %v50 = vlaneseq
    %v51 = vshrl.u32 %v50, 7
    %vm52 = vcmp.eq.f32.partialorder %v39, %v49
    %v53 = vsel %vm52, %v51, 3
    %v54 = vsel %vm42, %v53, 2147483647
    %v55 = vrot.slane %v54, 4
    %vm56 = vcmp.lt.s32.totalorder %v54, %v55
    %v57 = vsel %vm56, %v54, %v55
    %v58 = vrot.slane %v57, 2
    %vm59 = vcmp.lt.s32.totalorder %v57, %v58
    %v60 = vsel %vm59, %v57, %v58
    %v61 = vrot.slane %v60, 1
    %vm62 = vcmp.lt.s32.totalorder %v60, %v61
    %v63 = vsel %vm62, %v60, %v61
    %vm64 = vcmp.eq.s32.totalorder %v63, 0
    %v65 = vsel %vm64, 1, 0
    %vm66 = vcmp.eq.s32.totalorder %v65, 1
    %68 = vset.pattern.permute.xlu0 0
    %69 = vperm.xlu0 %68, %v40
    %v70 = vpop.permute.xlu0 %69
    %v72 = vsel %vm66, %v70, 0.0
    %v73 = vadd.f32 %v39, %v72
    %vm74 = vcmp.eq.s32.totalorder %v63, 1
    %v75 = vsel %vm74, 1, 0
    %vm76 = vcmp.eq.s32.totalorder %v75, 1
    %77 = vset.pattern.permute.xlu0 1
    %78 = vperm.xlu0 %77, %v40
    %v79 = vpop.permute.xlu0 %78
    %v81 = vsel %vm76, %v79, 0.0
    %v82 = vadd.f32 %v73, %v81
    %vm83 = vcmp.eq.s32.totalorder %v63, 2
    %v84 = vsel %vm83, 1, 0
    %vm85 = vcmp.eq.s32.totalorder %v84, 1
    %86 = vset.pattern.permute.xlu0 2
    %87 = vperm.xlu0 %86, %v40
    %v88 = vpop.permute.xlu0 %87
    %v90 = vsel %vm85, %v88, 0.0
    %v91 = vadd.f32 %v82, %v90
    %v92 = vadd.s32 %v51, 8
    %v93 = vadd.s32 %v51, 16
    %v94 = vadd.s32 %v51, 24
    %v95 = vlaneseq
    %v96 = vshrl.u32 %v95, 7
    %v97 = vsub.s32 0, %v96
    %v98 = vrot.slane %v41, %v97
    %vm99 = vcmp.eq.s32.totalorder %v51, %v98
    %vm100 = vcmp.eq.s32.totalorder %v92, %v98
    %vm101 = vcmp.eq.s32.totalorder %v93, %v98
    %vm102 = vcmp.eq.s32.totalorder %v94, %v98
    %v103 = vsel %vm99, 1, 0
    %v104 = vsel %vm100, 1, 0
    %v105 = vsel %vm101, 1, 0
    %v106 = vsel %vm102, 1, 0
    %v107 = vcvt.s32.f32 %v103
    %v108 = vcvt.s32.f32 %v104
    %v109 = vcvt.s32.f32 %v105
    %v110 = vcvt.s32.f32 %v106
    %vm111 = vcmask 261120
    %v113 = vsel %vm111, %v91, 0
    %115 = vmatprep.subr.mxu0 0.0
    %116 = vmatpush1.msra.mxu0 %v107
    %117 = vmatprep.subr.mxu0 0.0
    %118 = vmatpush1.msra.mxu0 %v108
    %119 = vmatprep.subr.mxu0 0.0
    %120 = vmatpush1.msra.mxu0 %v109
    %121 = vmatprep.subr.mxu0 0.0
    %122 = vmatpush1.msra.mxu0 %v110
    %123 = vmatprep.subr.mxu0 0.0
    %124 = vmatpush1.msra.mxu0 0.0
    %125 = vmatprep.subr.mxu0 0.0
    %126 = vmatpush1.msra.mxu0 0.0
    %127 = vmatprep.subr.mxu0 0.0
    %128 = vmatpush1.msra.mxu0 0.0
    %129 = vmatprep.subr.mxu0 0.0
    %130 = vmatpush1.msra.mxu0 0.0
    %131 = vmatprep.subr.mxu0 0.0
    %132 = vmatpush1.msra.mxu0 0.0
    %133 = vmatprep.subr.mxu0 0.0
    %134 = vmatpush1.msra.mxu0 0.0
    %135 = vmatprep.subr.mxu0 0.0
    %136 = vmatpush1.msra.mxu0 0.0
    %137 = vmatprep.subr.mxu0 0.0
    %138 = vmatpush1.msra.mxu0 0.0
    %139 = vmatprep.subr.mxu0 0.0
    %140 = vmatpush1.msra.mxu0 0.0
    %141 = vmatprep.subr.mxu0 0.0
    %142 = vmatpush1.msra.mxu0 0.0
    %143 = vmatprep.subr.mxu0 0.0
    %144 = vmatpush1.msra.mxu0 0.0
    %145 = vmatprep.subr.mxu0 0.0
    %146 = vmatpush1.msra.mxu0 0.0
    %147 = vmatprep.subr.mxu0 0.0
    %148 = vmatpush1.msra.mxu0 0.0
    %149 = vmatprep.subr.mxu0 0.0
    %150 = vmatpush1.msra.mxu0 0.0
    %151 = vmatprep.subr.mxu0 0.0
    %152 = vmatpush1.msra.mxu0 0.0
    %153 = vmatprep.subr.mxu0 0.0
    %154 = vmatpush1.msra.mxu0 0.0
    %155 = vmatprep.subr.mxu0 0.0
    %156 = vmatpush1.msra.mxu0 0.0
    %157 = vmatprep.subr.mxu0 0.0
    %158 = vmatpush1.msra.mxu0 0.0
    %159 = vmatprep.subr.mxu0 0.0
    %160 = vmatpush1.msra.mxu0 0.0
    %161 = vmatprep.subr.mxu0 0.0
    %162 = vmatpush1.msra.mxu0 0.0
    %163 = vmatprep.subr.mxu0 0.0
    %164 = vmatpush1.msra.mxu0 0.0
    %165 = vmatprep.subr.mxu0 0.0
    %166 = vmatpush1.msra.mxu0 0.0
    %167 = vmatprep.subr.mxu0 0.0
    %168 = vmatpush1.msra.mxu0 0.0
    %169 = vmatprep.subr.mxu0 0.0
    %170 = vmatpush1.msra.mxu0 0.0
    %171 = vmatprep.subr.mxu0 0.0
    %172 = vmatpush1.msra.mxu0 0.0
    %173 = vmatprep.subr.mxu0 0.0
    %174 = vmatpush1.msra.mxu0 0.0
    %175 = vmatprep.subr.mxu0 0.0
    %176 = vmatpush1.msra.mxu0 0.0
    %177 = vmatprep.subr.mxu0 0.0
    %178 = vmatpush1.msra.mxu0 0.0
    %179 = vmatprep.mubr.f32.mxu0 0.0
    %180 = vmatmul.mubr.f32.gmra.mrb[0].mxu0 %v113
    %v181 = vpop.f32.mrb[0].mxu0
    %v182 = vadd.f32 0.0, %v181
    %v183 = vpop.f32.mrb[0].mxu0
    %184 = vdwg.mxu0
    %185 = vst [vmem:[#allocation7] sm:$0x7] %v182
    // Predicated region
    $region22: #{tpu_custom_call.1} parent=1 // pred_check
      _
    $region23: #{tpu_custom_call.1} parent=1 // pred_check_branch
      %187 = sbr.rel (0) target = $region25
    $region24: #{tpu_custom_call.1} parent=1 // pred_region
      %s189 = ssub.s32 64, 64
      %190 = vsyncadd [#allocation4], %s189
      %s192 = sshll.u32 [#allocation7], 4
      %s193 = int_to_ptr.vmem [resolvable:$true] %s192
      %195 = dma.vmem_to_hbm [thread:$0]  %s193, 64, %s3, [#allocation4]
    $region25: #{tpu_custom_call.1} parent=1 // pred_fallthru
      _
    // Predicated region
    $region26: #{tpu_custom_call.1} parent=1 // pred_check
      _
    $region27: #{tpu_custom_call.1} parent=1 // pred_check_branch
      %197 = sbr.rel (0) target = $region29
    $region28: #{tpu_custom_call.1} parent=1 // pred_region
      %198 = dma.done [#allocation4], 64
    $region29: #{tpu_custom_call.1} parent=1 // pred_fallthru
      _
    %199 = vsyncpa [#allocation3], 1
    %200 = vsyncpa [#allocation6], 1
    %201 = vsyncpa [#allocation4], 1

</llo_original>
